<compile_context>
chip_gen: v7x
topology: tpu7x:2x2x1
jax: 0.10.0
libtpu: 0.0.40
codegen_flags: <defaults>
</compile_context>

<pallas_src>
import jax
import jax.numpy as jnp
from jax.experimental import pallas as pl
from jax.experimental.pallas import tpu as pltpu


def _linreg_kernel(params_ref, xT_ref, o_ref):
    # params_ref: SMEM f32[IN + 1] = [w_0, ..., w_{IN-1}, b]
    # xT_ref:     VMEM f32[IN, TB]   (batch on the lane axis)
    # o_ref:      VMEM f32[1,  TB]
    in_features = xT_ref.shape[0]
    xT = xT_ref[...]                                   # (IN, TB)

    # Pure VPU elementwise FMA: y = sum_k w_k * x_k + b  (no MXU, no XLU).
    acc = xT[0:1, :] * params_ref[0]
    for k in range(1, in_features):                    # unrolled at trace time
        acc = acc + xT[k:k + 1, :] * params_ref[k]
    acc = acc + params_ref[in_features]                # bias broadcast

    o_ref[...] = acc.astype(o_ref.dtype)


def linear_regression_forward(x, weight, bias):
    """x: (B, IN) f32; weight: (OUT, IN) f32 (OUT==1); bias: (OUT,) f32 -> (B, OUT) f32."""
    B, IN = x.shape
    OUT = weight.shape[0]
    assert OUT == 1, "LinearRegressionModel uses nn.Linear(2, 1)"

    # Layout plumbing stays in the JAX wrapper (fuses for free):
    #  * pack weights + bias into one scalar array for SMEM,
    #  * put batch on the lane axis (lane-dense output).
    params = jnp.concatenate(
        [weight.reshape(-1), bias.reshape(-1)]).astype(jnp.float32)   # (IN + 1,)
    xT = x.T                                                          # (IN, B)

    # Batch tile along the lane axis: big lane-dense tiles when batch is large,
    # otherwise a single whole-array block (legal since it equals full dims).
    TB = B
    for cand in (2048, 1024, 512, 256, 128):
        if B >= cand and B % cand == 0:
            TB = cand
            break
    num_tiles = B // TB

    cost = pl.CostEstimate(
        flops=2 * B * IN * OUT,
        bytes_accessed=4 * (B * IN + OUT * IN + OUT + B * OUT),
        transcendentals=0,
    )

    yT = pl.pallas_call(
        _linreg_kernel,
        out_shape=jax.ShapeDtypeStruct((OUT, B), jnp.float32),
        grid=(num_tiles,),
        in_specs=[
            # Scalars (weights + bias) live in SMEM; whole array, no pipelining.
            pl.BlockSpec(memory_space=pltpu.MemorySpace.SMEM),
            # x^T tiled along the lane (batch) axis.
            pl.BlockSpec((IN, TB), lambda i: (0, i)),
        ],
        out_specs=pl.BlockSpec((OUT, TB), lambda i: (0, i)),
        compiler_params=pltpu.CompilerParams(
            dimension_semantics=("parallel",)),
        cost_estimate=cost,
    )(params, xT)

    return yT.T                                                       # (B, OUT)


if __name__ == "__main__":
    key = jax.random.PRNGKey(0)
    kx, kw, kb = jax.random.split(key, 3)

    # Module shapes: nn.Linear(2, 1) -> weight (1, 2), bias (1,)
    batch = 8
    x = jax.random.normal(kx, (batch, 2), dtype=jnp.float32)
    weight = jax.random.normal(kw, (1, 2), dtype=jnp.float32) * 0.5
    bias = jax.random.normal(kb, (1,), dtype=jnp.float32) * 0.1

    y = linear_regression_forward(x, weight, bias)
    y = jax.block_until_ready(y)

    # Sanity check against plain JAX reference.
    y_ref = x @ weight.T + bias
    assert y.shape == (batch, 1)
    assert jnp.allclose(y, y_ref, atol=1e-5), "mismatch vs reference"
    print("KERNEL_OK")
</pallas_src>

<mosaic_0001>
module attributes {stable_mosaic.version = 11 : i64} {
  func.func @_linreg_kernel(%arg0: i32, %arg1: memref<3xf32, #tpu.memory_space<smem>>, %arg2: memref<2x8xf32, #tpu.memory_space<vmem>>, %arg3: memref<1x8xf32, #tpu.memory_space<vmem>>) attributes {dimension_semantics = [#tpu.dimension_semantics<parallel>], iteration_bounds = array<i64: 1>, scalar_prefetch = 0 : i64, scratch_operands = 0 : i64, tpu.core_type = #tpu.core_type<tc>, window_params = [{transform_indices = @transform_0, window_bounds = array<i64: 3>}, {transform_indices = @transform_1, window_bounds = array<i64: 2, 8>}, {transform_indices = @transform_2, window_bounds = array<i64: 1, 8>}]} {
    %c0 = arith.constant 0 : index
    %c0_0 = arith.constant 0 : index
    %0 = vector.load %arg2[%c0, %c0_0] : memref<2x8xf32, #tpu.memory_space<vmem>>, vector<2x8xf32>
    %1 = vector.extract_strided_slice %0 {offsets = [0, 0], sizes = [1, 8], strides = [1, 1]} : vector<2x8xf32> to vector<1x8xf32>
    %c0_1 = arith.constant 0 : index
    %2 = memref.load %arg1[%c0_1] : memref<3xf32, #tpu.memory_space<smem>>
    %3 = vector.broadcast %2 : f32 to vector<1x8xf32>
    %4 = arith.mulf %1, %3 : vector<1x8xf32>
    %5 = vector.extract_strided_slice %0 {offsets = [1, 0], sizes = [1, 8], strides = [1, 1]} : vector<2x8xf32> to vector<1x8xf32>
    %c1 = arith.constant 1 : index
    %6 = memref.load %arg1[%c1] : memref<3xf32, #tpu.memory_space<smem>>
    %7 = vector.broadcast %6 : f32 to vector<1x8xf32>
    %8 = arith.mulf %5, %7 : vector<1x8xf32>
    %9 = arith.addf %4, %8 : vector<1x8xf32>
    %c2 = arith.constant 2 : index
    %10 = memref.load %arg1[%c2] : memref<3xf32, #tpu.memory_space<smem>>
    %11 = vector.broadcast %10 : f32 to vector<1x8xf32>
    %12 = arith.addf %9, %11 : vector<1x8xf32>
    %c0_2 = arith.constant 0 : index
    %c0_3 = arith.constant 0 : index
    %13 = vector.load %arg3[%c0_2, %c0_3] : memref<1x8xf32, #tpu.memory_space<vmem>>, vector<1x8xf32>
    tpu.vector_store %arg3[%c0_2, %c0_3], %12 {strides = array<i32>} : memref<1x8xf32, #tpu.memory_space<vmem>>, vector<1x8xf32>,
    return
  }
  func.func @transform_0(%arg0: i32) -> i32 {
    %c0_i32 = arith.constant 0 : i32
    %c0_i32_0 = arith.constant 0 : i32
    return %c0_i32 : i32
  }
  func.func @transform_1(%arg0: i32) -> (i32, i32) {
    %c0_i32 = arith.constant 0 : i32
    %c0_i32_0 = arith.constant 0 : i32
    return %c0_i32, %arg0 : i32, i32
  }
  func.func @transform_2(%arg0: i32) -> (i32, i32) {
    %c0_i32 = arith.constant 0 : i32
    %c0_i32_0 = arith.constant 0 : i32
    return %c0_i32, %arg0 : i32, i32
  }
}

</mosaic_0001>

<llo_original>
// kernel: tpu_custom_call.1
$region0: #{tpu_custom_call.1}
  #allocation0 [shape = 'u32[]', space=smem, size = 0x4, offset = 0x4, fixed_abs, tag = 'smem constant byte address 0x4 - core index']
  #allocation1 [shape = 'u32[144,128]{1,0:T(1,128)}', space=vmem, size = 0x12000, scoped, tag = 'internal scratch']
  %s0 = inlined_call_operand.hbm [shape: f32[3], index: 0, kind: input, shape index: {}]
  %s1 = inlined_call_operand.vmem [shape: f32[2,8], index: 1, kind: input, shape index: {}]
  %s2 = inlined_call_operand.hbm [shape: f32[1,8], index: 2, kind: output, shape index: {}]
  %s3 = sld [smem:[#allocation0]]
  $region22: #{tpu_custom_call.1} parent=0
    _
  %s5 = ssub.s32 1, %s3
  %s6 = scalar_select 0, %s5, %s3
  $region1: #{tpu_custom_call.1} parent=0
    #allocation2 [shape = 'u8[512]{0}', space=smem, size = 0x200, scoped, tag = 'input window, operand 0, single buffered']
    #allocation3 [shape = 's32[1]{0}', space=sflag, size = 0x4, scoped, tag = 'scoped memory for tpu_custom_call.1']
    #allocation4 [shape = 's32[1]{0}', space=sflag, size = 0x4, scoped, tag = 'scoped memory for tpu_custom_call.1']
    #allocation5 [shape = 'u8[512]{0}', space=vmem, size = 0x400, scoped, tag = 'output window, operand 0, single buffered']
    %7 = vsyncpa [#allocation4], 0
    %8 = vsyncpa [#allocation3], 0
    // Predicated region
    $region2: #{tpu_custom_call.1} parent=1 // pred_check
      _
    $region3: #{tpu_custom_call.1} parent=1 // pred_check_branch
      %10 = sbr.rel (0) target = $region5
    $region4: #{tpu_custom_call.1} parent=1 // pred_region
      %s12 = ssub.s32 16, 16
      %13 = vsyncadd [#allocation4], %s12
      %16 = dma.hbm_to_smem %s0, 16, [#allocation2], [#allocation4]
    $region5: #{tpu_custom_call.1} parent=1 // pred_fallthru
      _
    // Predicated region
    $region6: #{tpu_custom_call.1} parent=1 // pred_check
      _
    $region7: #{tpu_custom_call.1} parent=1 // pred_check_branch
      %18 = sbr.rel (0) target = $region9
    $region8: #{tpu_custom_call.1} parent=1 // pred_region
      _
    $region9: #{tpu_custom_call.1} parent=1 // pred_fallthru
      _
    // Predicated region
    $region10: #{tpu_custom_call.1} parent=1 // pred_check
      _
    $region11: #{tpu_custom_call.1} parent=1 // pred_check_branch
      %20 = sbr.rel (0) target = $region13
    $region12: #{tpu_custom_call.1} parent=1 // pred_region
      %21 = dma.done [#allocation4], 16
    $region13: #{tpu_custom_call.1} parent=1 // pred_fallthru
      _
    %22 = sfence
    %v23 = vld [vmem:[%s1] sm:$0x3]
    %s24 = sld [smem:[#allocation2]]
    %v25 = vstv %s24
    %v26 = vmul.f32 %v23, %v25
    %s27 = sld [smem:[#allocation2 + $0x1]]
    %v28 = vstv %s27
    %v29 = vmul.f32 %v23, %v28
    %v31 = vrot.slane %v29, 1
    %v33 = vadd.f32 %v26, %v31
    %s34 = sld [smem:[#allocation2 + $0x2]]
    %v35 = vstv %s34
    %v36 = vadd.f32 %v33, %v35
    %vm37 = vcmask 57344
    %38 = vst.msk [vmem:[#allocation5] sm:$0x1] %vm37, %v36
    // Predicated region
    $region14: #{tpu_custom_call.1} parent=1 // pred_check
      _
    $region15: #{tpu_custom_call.1} parent=1 // pred_check_branch
      %40 = sbr.rel (0) target = $region17
    $region16: #{tpu_custom_call.1} parent=1 // pred_region
      %s42 = ssub.s32 16, 16
      %43 = vsyncadd [#allocation3], %s42
      %s45 = sshll.u32 [#allocation5], 4
      %s46 = int_to_ptr.vmem [resolvable:$true] %s45
      %48 = dma.vmem_to_hbm [thread:$0]  %s46, 16, %s2, [#allocation3]
    $region17: #{tpu_custom_call.1} parent=1 // pred_fallthru
      _
    // Predicated region
    $region18: #{tpu_custom_call.1} parent=1 // pred_check
      _
    $region19: #{tpu_custom_call.1} parent=1 // pred_check_branch
      %50 = sbr.rel (0) target = $region21
    $region20: #{tpu_custom_call.1} parent=1 // pred_region
      %51 = dma.done [#allocation3], 16
    $region21: #{tpu_custom_call.1} parent=1 // pred_fallthru
      _
    %52 = vsyncpa [#allocation3], 1
    %53 = vsyncpa [#allocation4], 1

</llo_original>
